<compile_context>
chip_gen: v6e
topology: v6e:2x2x1
jax: 0.10.0
libtpu: 0.0.40
codegen_flags: <defaults>
</compile_context>

<pallas_src>
import functools
import math

import jax
import jax.numpy as jnp
from jax import lax
from jax.experimental import pallas as pl
from jax.experimental.pallas import tpu as pltpu


def basic_block_kernel(p_ref, w_ref, b_ref, o_ref, *, cout):
    # p_ref: (K9pad, TM)      im2col patch tile, fused batch*spatial on lanes
    # w_ref: (2*Cout, K9pad)  fused conv1/conv2 weights, BN scale pre-folded
    # b_ref: (2*Cout, 1)      fused BN biases
    # o_ref: (Cout, TM)       output tile (channel-major, lane-dense)
    acc = jnp.dot(w_ref[...], p_ref[...],
                  preferred_element_type=jnp.float32)          # (2*Cout, TM)
    y = acc + b_ref[...]                                       # bias (lane bcast)
    # Cout is a multiple of 8 -> both slices fall on sublane-tile boundaries.
    out = jnp.maximum(y[:cout, :], 0.0) + y[cout:, :]          # relu(br1) + br2
    o_ref[...] = out.astype(o_ref.dtype)


def _choose_tiling(m_total, *, lane=128, tm_cap=1024):
    """Pick a lane-dense tile width and grid size for the fused spatial axis.

    - TM is always a multiple of 128 (lane-dense, unmasked stores).
    - TM is capped (~1024) so double-buffered tiles stay well inside the
      default scoped-VMEM limits on all generations (v5e 16 MiB included).
    - >=2 grid steps whenever there is >=2 lane-blocks of work, so both v7x
      TensorCores are occupied ("parallel" axis).
    """
    m_pad = math.ceil(m_total / lane) * lane
    n_blocks = m_pad // lane
    steps = max(min(2, n_blocks), math.ceil(m_pad / tm_cap))
    blocks_per_step = math.ceil(n_blocks / steps)
    tm = blocks_per_step * lane
    m_grid = steps * tm
    return tm, steps, m_grid


def basic_block_pallas(x_nchw, w1, w2, bn1, bn2, *, stride=1, eps=1e-5):
    """x_nchw: (N, Cin, H, W) f32; w*: (Cout, Cin, 3, 3); bn* = (gamma, beta, mean, var)."""
    N, Cin, H, W = x_nchw.shape
    Cout = w1.shape[0]
    Ho = (H + 2 - 3) // stride + 1
    Wo = (W + 2 - 3) // stride + 1
    M = Ho * Wo
    M_total = N * M                       # batch folded into the spatial axis
    K9 = 9 * Cin
    K9pad = math.ceil(K9 / 8) * 8         # sublane-aligned contraction dim

    # ---- wrapper-side im2col producing a tap-major (K9pad, N*Ho*Wo) matrix
    # (strided slicing stays out of the kernel; spatial axis is lane-major).
    x_pad = jnp.pad(x_nchw, ((0, 0), (0, 0), (1, 1), (1, 1)))
    taps = []
    for dy in range(3):
        for dx in range(3):
            sl = x_pad[:, :,
                       dy:dy + (Ho - 1) * stride + 1:stride,
                       dx:dx + (Wo - 1) * stride + 1:stride]      # (N,Cin,Ho,Wo)
            taps.append(jnp.transpose(sl, (1, 0, 2, 3)).reshape(Cin, M_total))
    patches = jnp.concatenate(taps, axis=0)                       # (K9, N*M)

    # ---- fold eval-mode BatchNorm into the conv weights; fuse both branches.
    # TODO(synk): PyTorch BatchNorm2d defaults to training-mode batch stats;
    # we implement inference-mode semantics with running statistics.
    def prep(w, bn):
        gamma, beta, mean, var = bn
        scale = gamma / jnp.sqrt(var + eps)           # (Cout,)
        bias = beta - mean * scale                    # (Cout,)
        # OIHW -> (Cout, 3, 3, Cin) -> (Cout, 9*Cin); column = (dy*3+dx)*Cin+ci
        wt = jnp.transpose(w, (0, 2, 3, 1)).reshape(Cout, K9)
        return wt * scale[:, None], bias

    w1f, b1 = prep(w1, bn1)
    w2f, b2 = prep(w2, bn2)
    wf = jnp.concatenate([w1f, w2f], axis=0)          # (2*Cout, 9*Cin)
    bf = jnp.concatenate([b1, b2], axis=0)[:, None]   # (2*Cout, 1)

    # ---- zero-pad contraction dim (multiple of 8) and spatial dim (multiple
    # of TM).  Zero rows/columns do not change the matmul result; the padded
    # spatial columns are sliced away after the call.
    TM, steps, M_grid = _choose_tiling(M_total)
    if K9pad > K9:
        patches = jnp.pad(patches, ((0, K9pad - K9), (0, 0)))
        wf = jnp.pad(wf, ((0, 0), (0, K9pad - K9)))
    if M_grid > M_total:
        patches = jnp.pad(patches, ((0, 0), (0, M_grid - M_total)))

    kernel = functools.partial(basic_block_kernel, cout=Cout)

    out_flat = pl.pallas_call(
        kernel,
        out_shape=jax.ShapeDtypeStruct((Cout, M_grid), x_nchw.dtype),
        grid_spec=pltpu.PrefetchScalarGridSpec(
            num_scalar_prefetch=0,
            grid=(steps,),
            in_specs=[
                pl.BlockSpec((K9pad, TM), lambda m: (0, m)),
                pl.BlockSpec((2 * Cout, K9pad), lambda m: (0, 0)),   # resident
                pl.BlockSpec((2 * Cout, 1), lambda m: (0, 0)),       # resident
            ],
            out_specs=pl.BlockSpec((Cout, TM), lambda m: (0, m)),
        ),
        compiler_params=pltpu.CompilerParams(
            dimension_semantics=("parallel",)),
    )(patches, wf, bf)

    # (Cout, N*Ho*Wo) -> NCHW, matching the PyTorch module's output layout.
    out = out_flat[:, :M_total].reshape(Cout, N, Ho, Wo)
    return jnp.transpose(out, (1, 0, 2, 3))


def basic_block_ref(x_nchw, w1, w2, bn1, bn2, *, stride=1, eps=1e-5):
    """Pure-JAX reference mirroring the PyTorch forward (eval-mode BN)."""
    dn = lax.conv_dimension_numbers(x_nchw.shape, w1.shape,
                                    ("NCHW", "OIHW", "NCHW"))

    def conv(w):
        return lax.conv_general_dilated(
            x_nchw, w, window_strides=(stride, stride),
            padding=((1, 1), (1, 1)), dimension_numbers=dn)

    def bn(y, params):
        gamma, beta, mean, var = (p.reshape(1, -1, 1, 1) for p in params)
        return (y - mean) / jnp.sqrt(var + eps) * gamma + beta

    y1 = jnp.maximum(bn(conv(w1), bn1), 0.0)
    y2 = bn(conv(w2), bn2)
    return y1 + y2


if __name__ == "__main__":
    # Small shapes consistent with the module: batch=2, inplanes=4, planes=8,
    # 16x16 spatial.
    N, Cin, Cout, H, W = 2, 4, 8, 16, 16

    key = jax.random.PRNGKey(0)
    keys = jax.random.split(key, 12)

    x = jax.random.normal(keys[0], (N, Cin, H, W), jnp.float32)

    w1 = jax.random.normal(keys[1], (Cout, Cin, 3, 3), jnp.float32) * 0.1
    w2 = jax.random.normal(keys[2], (Cout, Cin, 3, 3), jnp.float32) * 0.1

    # BatchNorm params (eval-mode / folded running stats).
    bn1 = (jax.random.uniform(keys[3], (Cout,), jnp.float32, 0.5, 1.5),
           jax.random.normal(keys[4], (Cout,), jnp.float32) * 0.1,
           jax.random.normal(keys[5], (Cout,), jnp.float32) * 0.1,
           jax.random.uniform(keys[6], (Cout,), jnp.float32, 0.5, 1.5))
    bn2 = (jax.random.uniform(keys[7], (Cout,), jnp.float32, 0.5, 1.5),
           jax.random.normal(keys[8], (Cout,), jnp.float32) * 0.1,
           jax.random.normal(keys[9], (Cout,), jnp.float32) * 0.1,
           jax.random.uniform(keys[10], (Cout,), jnp.float32, 0.5, 1.5))

    ok = True
    for stride in (1, 2):
        out = jax.block_until_ready(
            basic_block_pallas(x, w1, w2, bn1, bn2, stride=stride))
        ref = jax.block_until_ready(
            basic_block_ref(x, w1, w2, bn1, bn2, stride=stride))
        Ho = (H + 2 - 3) // stride + 1
        Wo = (W + 2 - 3) // stride + 1
        assert out.shape == (N, Cout, Ho, Wo), (stride, out.shape)
        err = float(jnp.max(jnp.abs(out - ref)))
        ok = ok and bool(jnp.allclose(out, ref, atol=1e-4, rtol=1e-4))
        assert ok, (stride, err)

    print("KERNEL_OK")
</pallas_src>

<mosaic_0001>
module attributes {stable_mosaic.version = 11 : i64} {
  func.func @basic_block_kernel(%arg0: i32, %arg1: memref<40x256xf32, #tpu.memory_space<vmem>>, %arg2: memref<16x40xf32, #tpu.memory_space<vmem>>, %arg3: memref<16x1xf32, #tpu.memory_space<vmem>>, %arg4: memref<8x256xf32, #tpu.memory_space<vmem>>) attributes {dimension_semantics = [#tpu.dimension_semantics<parallel>], iteration_bounds = array<i64: 2>, scalar_prefetch = 0 : i64, scratch_operands = 0 : i64, tpu.core_type = #tpu.core_type<tc>, window_params = [{transform_indices = @transform_0, window_bounds = array<i64: 40, 256>}, {pipeline_mode = #tpu.pipeline_mode<synchronous>, transform_indices = @transform_1, window_bounds = array<i64: 16, 40>}, {pipeline_mode = #tpu.pipeline_mode<synchronous>, transform_indices = @transform_2, window_bounds = array<i64: 16, 1>}, {transform_indices = @transform_3, window_bounds = array<i64: 8, 256>}]} {
    %c0 = arith.constant 0 : index
    %c0_0 = arith.constant 0 : index
    %0 = vector.load %arg2[%c0, %c0_0] : memref<16x40xf32, #tpu.memory_space<vmem>>, vector<16x40xf32>
    %c0_1 = arith.constant 0 : index
    %c0_2 = arith.constant 0 : index
    %1 = vector.load %arg1[%c0_1, %c0_2] : memref<40x256xf32, #tpu.memory_space<vmem>>, vector<40x256xf32>
    %cst = arith.constant dense<0.000000e+00> : vector<16x256xf32>
    %2 = tpu.matmul %0, %1, %cst {dimension_numbers = #tpu.dot_dimension_numbers<[1], [0], [0], [1], [0, 0, 1, 1], [], []>} : vector<16x40xf32>, vector<40x256xf32>, vector<16x256xf32> -> vector<16x256xf32>
    %c0_3 = arith.constant 0 : index
    %c0_4 = arith.constant 0 : index
    %3 = vector.load %arg3[%c0_3, %c0_4] : memref<16x1xf32, #tpu.memory_space<vmem>>, vector<16x1xf32>
    %4 = vector.broadcast %3 : vector<16x1xf32> to vector<16x256xf32>
    %5 = arith.addf %2, %4 : vector<16x256xf32>
    %6 = vector.extract_strided_slice %5 {offsets = [0, 0], sizes = [8, 256], strides = [1, 1]} : vector<16x256xf32> to vector<8x256xf32>
    %cst_5 = arith.constant 0.000000e+00 : f32
    %7 = vector.broadcast %cst_5 : f32 to vector<8x256xf32>
    %8 = arith.maximumf %6, %7 : vector<8x256xf32>
    %9 = vector.extract_strided_slice %5 {offsets = [8, 0], sizes = [8, 256], strides = [1, 1]} : vector<16x256xf32> to vector<8x256xf32>
    %10 = arith.addf %8, %9 : vector<8x256xf32>
    %c0_6 = arith.constant 0 : index
    %c0_7 = arith.constant 0 : index
    %11 = vector.load %arg4[%c0_6, %c0_7] : memref<8x256xf32, #tpu.memory_space<vmem>>, vector<8x256xf32>
    tpu.vector_store %arg4[%c0_6, %c0_7], %10 {strides = array<i32>} : memref<8x256xf32, #tpu.memory_space<vmem>>, vector<8x256xf32>,
    return
  }
  func.func @transform_0(%arg0: i32) -> (i32, i32) {
    %c0_i32 = arith.constant 0 : i32
    %c0_i32_0 = arith.constant 0 : i32
    return %c0_i32, %arg0 : i32, i32
  }
  func.func @transform_1(%arg0: i32) -> (i32, i32) {
    %c0_i32 = arith.constant 0 : i32
    %c0_i32_0 = arith.constant 0 : i32
    %c0_i32_1 = arith.constant 0 : i32
    return %c0_i32, %c0_i32_0 : i32, i32
  }
  func.func @transform_2(%arg0: i32) -> (i32, i32) {
    %c0_i32 = arith.constant 0 : i32
    %c0_i32_0 = arith.constant 0 : i32
    %c0_i32_1 = arith.constant 0 : i32
    return %c0_i32, %c0_i32_0 : i32, i32
  }
  func.func @transform_3(%arg0: i32) -> (i32, i32) {
    %c0_i32 = arith.constant 0 : i32
    %c0_i32_0 = arith.constant 0 : i32
    return %c0_i32, %arg0 : i32, i32
  }
}

</mosaic_0001>

<llo_original>
// kernel: tpu_custom_call.1
$region0: #{tpu_custom_call.1}
  #allocation0 [shape = 'u32[]', space=smem, size = 0x4, offset = 0x4, fixed_abs, tag = 'smem constant byte address 0x4 - core index']
  #allocation1 [shape = 'u32[144,128]{1,0:T(1,128)}', space=vmem, size = 0x12000, scoped, tag = 'internal scratch']
  %s0 = inlined_call_operand.hbm [shape: f32[40,512], index: 0, kind: input, shape index: {}]
  %s1 = inlined_call_operand.vmem [shape: f32[16,40], index: 1, kind: input, shape index: {}]
  %s2 = inlined_call_operand.vmem [shape: f32[16,1], index: 2, kind: input, shape index: {}]
  %s3 = inlined_call_operand.hbm [shape: f32[8,512], index: 3, kind: output, shape index: {}]
  %s4 = sld [smem:[#allocation0]]
  $region49: #{tpu_custom_call.1} parent=0
    _
  %s6 = ssub.s32 1, %s4
  %s7 = scalar_select 0, %s6, %s4
  $region1: #{tpu_custom_call.1} parent=0
    #allocation2 [shape = 'u8[81920]{0}', space=vmem, size = 0x14000, scoped, tag = 'input window, operand 0']
    #allocation3 [shape = 's32[2]{0}', space=sflag, size = 0x8, scoped, tag = 'scoped memory for tpu_custom_call.1']
    #allocation4 [shape = 's32[2]{0}', space=sflag, size = 0x8, scoped, tag = 'scoped memory for tpu_custom_call.1']
    #allocation5 [shape = 'u8[16384]{0}', space=vmem, size = 0x4000, scoped, tag = 'output window, operand 0']
    %8 = vsyncpa [#allocation3], 0
    %s9 = scalar_lea.sflag [#allocation3], 1
    %10 = vsyncpa %s9, 0
    %11 = vsyncpa [#allocation4], 0
    %s12 = scalar_lea.sflag [#allocation4], 1
    %13 = vsyncpa %s12, 0
    loop: start=0, step=1, limit=4
    $region2: #{tpu_custom_call.1} parent=1 // loop_pre_header
      _
    $region3: #{tpu_custom_call.1} parent=1 // loop_header
      %s15 = sphi 0, %s19
      %p16 = scmp.ge.s32.totalorder %s15, 4
      %s25 = sphi 0, %s27
      %s28 = sphi 0, %s25
      %s29 = sphi 0, %s28
      %s45 = sphi 0, %s29
      %s49 = sphi 0, %s49
      %s51 = sphi 0, %s49
      %s52 = sphi 0, %s51
      %s66 = sphi 0, %s52
      %s70 = sphi 0, %s70
      %s72 = sphi 0, %s70
      %s73 = sphi 0, %s72
      %s87 = sphi 0, %s73
      %s93 = sphi 0, %s95
      %s96 = sphi 0, %s93
      %s97 = sphi 0, %s96
      %s113 = sphi 0, %s97
    $region4: #{tpu_custom_call.1} parent=1 // loop_header_branch
      %18 = sbr.rel (%p16) target = $region8
    $region5: #{tpu_custom_call.1} parent=1 // loop_body
      %s20 = ssub.s32 %s15, 1
      %s21 = ssub.s32 %s15, 2
      %s22 = sadd.s32 %s15, 1
      %s23 = ssub.s32 %s15, %s22
      %p24 = scmp.eq.s32.totalorder %s23, 0
      %s26 = sadd.s32 %s25, 1
      %s27 = scalar_select %p24, %s25, %s26
      %p30 = pneg %p24
      %p31 = scmp.eq.s32.totalorder %s15, 1
      %p32 = por %p30, %p31
      %p33 = scmp.ne.s32.totalorder %s25, %s28
      %p34 = scmp.eq.s32.totalorder %s15, 0
      %p35 = por %p33, %p34
      %p36 = scmp.ne.s32.totalorder %s25, %s28
      %p37 = scmp.eq.s32.totalorder %s20, 1
      %p38 = por %p36, %p37
      %p39 = scmp.ne.s32.totalorder %s28, %s29
      %p40 = scmp.eq.s32.totalorder %s20, 0
      %p41 = por %p39, %p40
      %p42 = scmp.ne.s32.totalorder %s28, %s29
      %p43 = scmp.eq.s32.totalorder %s21, 1
      %p44 = por %p42, %p43
      %p46 = scmp.ne.s32.totalorder %s29, %s45
      %p47 = scmp.eq.s32.totalorder %s21, 0
      %p48 = por %p46, %p47
      %s50 = sadd.s32 %s49, 1
      %p53 = scmp.eq.s32.totalorder %s15, 1
      %p54 = scmp.ne.s32.totalorder %s49, %s51
      %p55 = scmp.eq.s32.totalorder %s15, 0
      %p56 = por %p54, %p55
      %p57 = scmp.ne.s32.totalorder %s49, %s51
      %p58 = scmp.eq.s32.totalorder %s20, 1
      %p59 = por %p57, %p58
      %p60 = scmp.ne.s32.totalorder %s51, %s52
      %p61 = scmp.eq.s32.totalorder %s20, 0
      %p62 = por %p60, %p61
      %p63 = scmp.ne.s32.totalorder %s51, %s52
      %p64 = scmp.eq.s32.totalorder %s21, 1
      %p65 = por %p63, %p64
      %p67 = scmp.ne.s32.totalorder %s52, %s66
      %p68 = scmp.eq.s32.totalorder %s21, 0
      %p69 = por %p67, %p68
      %s71 = sadd.s32 %s70, 1
      %p74 = scmp.eq.s32.totalorder %s15, 1
      %p75 = scmp.ne.s32.totalorder %s70, %s72
      %p76 = scmp.eq.s32.totalorder %s15, 0
      %p77 = por %p75, %p76
      %p78 = scmp.ne.s32.totalorder %s70, %s72
      %p79 = scmp.eq.s32.totalorder %s20, 1
      %p80 = por %p78, %p79
      %p81 = scmp.ne.s32.totalorder %s72, %s73
      %p82 = scmp.eq.s32.totalorder %s20, 0
      %p83 = por %p81, %p82
      %p84 = scmp.ne.s32.totalorder %s72, %s73
      %p85 = scmp.eq.s32.totalorder %s21, 1
      %p86 = por %p84, %p85
      %p88 = scmp.ne.s32.totalorder %s73, %s87
      %p89 = scmp.eq.s32.totalorder %s21, 0
      %p90 = por %p88, %p89
      %s91 = ssub.s32 %s15, %s22
      %p92 = scmp.eq.s32.totalorder %s91, 0
      %s94 = sadd.s32 %s93, 1
      %s95 = scalar_select %p92, %s93, %s94
      %p98 = pneg %p92
      %p99 = scmp.eq.s32.totalorder %s15, 1
      %p100 = por %p98, %p99
      %p101 = scmp.ne.s32.totalorder %s93, %s96
      %p102 = scmp.eq.s32.totalorder %s15, 0
      %p103 = por %p101, %p102
      %p104 = scmp.ne.s32.totalorder %s93, %s96
      %p105 = scmp.eq.s32.totalorder %s20, 1
      %p106 = por %p104, %p105
      %p107 = scmp.ne.s32.totalorder %s96, %s97
      %p108 = scmp.eq.s32.totalorder %s20, 0
      %p109 = por %p107, %p108
      %p110 = scmp.ne.s32.totalorder %s96, %s97
      %p111 = scmp.eq.s32.totalorder %s21, 1
      %p112 = por %p110, %p111
      %p114 = scmp.ne.s32.totalorder %s97, %s113
      %p115 = scmp.eq.s32.totalorder %s21, 0
      %p116 = por %p114, %p115
      %p117 = scmp.le.s32.totalorder 1, %s15
      %p118 = scmp.lt.s32.totalorder %s15, 3
      %p119 = pnand %p117, %p118
      %p120 = pneg %p119
      // Predicated region
      $region9: #{tpu_custom_call.1} parent=5 // pred_check
        _
      $region10: #{tpu_custom_call.1} parent=5 // pred_check_branch
        %122 = sbr.rel (%p119) target = $region12
      $region11: #{tpu_custom_call.1} parent=5 // pred_region
        %s123 = ssub.s32 %s15, 1
        // Predicated region
        $region13: #{tpu_custom_call.1} parent=11 // pred_check
          %p124 = pneg %p62
        $region14: #{tpu_custom_call.1} parent=11 // pred_check_branch
          %126 = sbr.rel (%p124) target = $region16
        $region15: #{tpu_custom_call.1} parent=11 // pred_region
          _
        $region16: #{tpu_custom_call.1} parent=11 // pred_fallthru
          _
        // Predicated region
        $region17: #{tpu_custom_call.1} parent=11 // pred_check
          %p127 = pneg %p83
        $region18: #{tpu_custom_call.1} parent=11 // pred_check_branch
          %129 = sbr.rel (%p127) target = $region20
        $region19: #{tpu_custom_call.1} parent=11 // pred_region
          _
        $region20: #{tpu_custom_call.1} parent=11 // pred_fallthru
          _
      $region12: #{tpu_custom_call.1} parent=5 // pred_fallthru
        _
      %p130 = scmp.lt.s32.totalorder %s15, 2
      // Predicated region
      $region21: #{tpu_custom_call.1} parent=5 // pred_check
        %p131 = pneg %p130
      $region22: #{tpu_custom_call.1} parent=5 // pred_check_branch
        %133 = sbr.rel (%p131) target = $region24
      $region23: #{tpu_custom_call.1} parent=5 // pred_region
        // Predicated region
        $region25: #{tpu_custom_call.1} parent=23 // pred_check
          %p134 = pneg %p35
        $region26: #{tpu_custom_call.1} parent=23 // pred_check_branch
          %136 = sbr.rel (%p134) target = $region28
        $region27: #{tpu_custom_call.1} parent=23 // pred_region
          %s137 = sand.u32 %s25, 1
          %s138 = scalar_lea.sflag [#allocation3], %s137
          %s139 = sand.u32 %s25, 1
          %s140 = smul.addr %s139, 80
          %s141 = scalar_lea.vmem [#allocation2], %s140
          %s142 = smul.u32 2, %s15
          %s144 = ssub.s32 1280, 1280
          %145 = vsyncadd %s138, %s144
          %s146 = smul.addr %s142, 128
          %s147 = scalar_lea.hbm %s0, %s146
          %s148 = sshll.u32 %s141, 4
          %s149 = int_to_ptr.vmem [resolvable:$true] %s148
          %154 = dma.hbm_to_vmem [thread:$0]  %s147, 1280, %s149, %s138, 512, 256, 16
        $region28: #{tpu_custom_call.1} parent=23 // pred_fallthru
          _
      $region24: #{tpu_custom_call.1} parent=5 // pred_fallthru
        _
      %p155 = scmp.le.s32.totalorder 1, %s15
      %p156 = scmp.lt.s32.totalorder %s15, 3
      %p157 = pnand %p155, %p156
      %p158 = pneg %p157
      // Predicated region
      $region29: #{tpu_custom_call.1} parent=5 // pred_check
        _
      $region30: #{tpu_custom_call.1} parent=5 // pred_check_branch
        %160 = sbr.rel (%p157) target = $region32
      $region31: #{tpu_custom_call.1} parent=5 // pred_region
        %s161 = ssub.s32 %s15, 1
        %s162 = sand.u32 %s28, 1
        %s163 = scalar_lea.sflag [#allocation3], %s162
        %s164 = sand.u32 %s28, 1
        %s165 = smul.addr %s164, 80
        %s166 = scalar_lea.vmem [#allocation2], %s165
        // Predicated region
        $region33: #{tpu_custom_call.1} parent=31 // pred_check
          %p167 = pneg %p41
        $region34: #{tpu_custom_call.1} parent=31 // pred_check_branch
          %169 = sbr.rel (%p167) target = $region36
        $region35: #{tpu_custom_call.1} parent=31 // pred_region
          %170 = dma.done %s163, 1280
        $region36: #{tpu_custom_call.1} parent=31 // pred_fallthru
          _
        %s171 = sand.u32 %s28, 1
        %s172 = scalar_lea.sflag [#allocation3], %s171
        %s173 = sand.u32 %s28, 1
        %s174 = smul.addr %s173, 80
        %s175 = scalar_lea.vmem [#allocation2], %s174
        %p176 = pneg %p41
        %p177 = pneg %p38
        %p178 = pneg %p62
        %p179 = pneg %p59
        %p180 = pneg %p83
        %p181 = pneg %p80
        %p182 = pneg %p109
        %p183 = pneg %p106
        %s184 = sand.u32 %s96, 1
        %s185 = scalar_lea.sflag [#allocation4], %s184
        %s186 = sand.u32 %s96, 1
        %s187 = smul.addr %s186, 16
        %s188 = scalar_lea.vmem [#allocation5], %s187
        %s189 = smul.u32 2, %s20
        %s190 = smul.u32 2, %s20
        %v191 = vld [vmem:[%s1] sm:$0xff]
        %v192 = vld [vmem:[%s1 + $0x8] sm:$0xff]
        %v193 = vld [vmem:[%s166] sm:$0xff]
        %v194 = vld [vmem:[%s166 + $0x8] sm:$0xff]
        %v195 = vld [vmem:[%s166 + $0x10] sm:$0xff]
        %v196 = vld [vmem:[%s166 + $0x18] sm:$0xff]
        %v197 = vld [vmem:[%s166 + $0x20] sm:$0xff]
        %v198 = vld [vmem:[%s166 + $0x28] sm:$0xff]
        %v199 = vld [vmem:[%s166 + $0x30] sm:$0xff]
        %v200 = vld [vmem:[%s166 + $0x38] sm:$0xff]
        %v201 = vld [vmem:[%s166 + $0x40] sm:$0xff]
        %v202 = vld [vmem:[%s166 + $0x48] sm:$0xff]
        %v203 = vld [vmem:[%s2] sm:$0xff]
        %v204 = vld [vmem:[%s2 + $0x8] sm:$0xff]
        %206 = vset.pattern.permute.xlu0 0
        %207 = vperm.xlu0 %206, %v203
        %v208 = vpop.permute.xlu0 %207
        %211 = vset.pattern.permute.xlu0 0
        %212 = vperm.xlu0 %211, %v204
        %v213 = vpop.permute.xlu0 %212
        %vm215 = vcmask 326656
        %v217 = vsel %vm215, %v191, 0
        %v220 = vsel %vm215, %v192, 0
        %222 = vmatprep.subr.mxu0 0.0
        %223 = vmatpush1.msra.mxu0 0.0
        %224 = vmatprep.subr.mxu0 0.0
        %225 = vmatpush1.msra.mxu0 0.0
        %226 = vmatprep.subr.mxu0 0.0
        %227 = vmatpush1.msra.mxu0 0.0
        %228 = vmatprep.subr.mxu0 0.0
        %229 = vmatpush1.msra.mxu0 0.0
        %230 = vmatprep.subr.mxu0 0.0
        %231 = vmatpush1.msra.mxu0 0.0
        %232 = vmatprep.subr.mxu0 0.0
        %233 = vmatpush1.msra.mxu0 0.0
        %234 = vmatprep.subr.mxu0 0.0
        %235 = vmatpush1.msra.mxu0 0.0
        %236 = vmatprep.subr.mxu0 0.0
        %237 = vmatpush1.msra.mxu0 0.0
        %238 = vmatprep.subr.mxu0 0.0
        %239 = vmatpush1.msra.mxu0 0.0
        %240 = vmatprep.subr.mxu0 0.0
        %241 = vmatpush1.msra.mxu0 0.0
        %242 = vmatprep.subr.mxu0 0.0
        %243 = vmatpush1.msra.mxu0 0.0
        %244 = vmatprep.subr.mxu0 %v202
        %245 = vmatpush1.msra.mxu0 %v201
        %246 = vmatprep.subr.mxu0 %v200
        %247 = vmatpush1.msra.mxu0 %v199
        %248 = vmatprep.subr.mxu0 %v198
        %249 = vmatpush1.msra.mxu0 %v197
        %250 = vmatprep.subr.mxu0 %v196
        %251 = vmatpush1.msra.mxu0 %v195
        %252 = vmatprep.subr.mxu0 %v194
        %253 = vmatpush1.msra.mxu0 %v193
        %254 = vmatprep.subr.mxu0 0.0
        %255 = vmatpush2.msra.mxu0 0.0
        %256 = vmatprep.subr.mxu0 0.0
        %257 = vmatpush2.msra.mxu0 0.0
        %258 = vmatprep.subr.mxu0 0.0
        %259 = vmatpush2.msra.mxu0 0.0
        %260 = vmatprep.subr.mxu0 0.0
        %261 = vmatpush2.msra.mxu0 0.0
        %262 = vmatprep.subr.mxu0 0.0
        %263 = vmatpush2.msra.mxu0 0.0
        %264 = vmatprep.subr.mxu0 0.0
        %265 = vmatpush2.msra.mxu0 0.0
        %266 = vmatprep.subr.mxu0 0.0
        %267 = vmatpush2.msra.mxu0 0.0
        %268 = vmatprep.subr.mxu0 0.0
        %269 = vmatpush2.msra.mxu0 0.0
        %270 = vmatprep.subr.mxu0 0.0
        %271 = vmatpush2.msra.mxu0 0.0
        %272 = vmatprep.subr.mxu0 0.0
        %273 = vmatpush2.msra.mxu0 0.0
        %274 = vmatprep.subr.mxu0 0.0
        %275 = vmatpush2.msra.mxu0 0.0
        %276 = vmatprep.subr.mxu0 0.0
        %277 = vmatpush2.msra.mxu0 0.0
        %278 = vmatprep.subr.mxu0 0.0
        %279 = vmatpush2.msra.mxu0 0.0
        %280 = vmatprep.subr.mxu0 0.0
        %281 = vmatpush2.msra.mxu0 0.0
        %282 = vmatprep.subr.mxu0 0.0
        %283 = vmatpush2.msra.mxu0 0.0
        %284 = vmatprep.subr.mxu0 0.0
        %285 = vmatpush2.msra.mxu0 0.0
        %286 = vmatprep.mubr.f32.mxu0 0.0
        %287 = vmatmul.mubr.f32.gmra.mxu0 %v217
        %v288 = vpop.f32.mrf.mxu0
        %v289 = vadd.f32 %v208, %v288
        %v290 = vpop.f32.mrf.mxu0
        %v291 = vadd.f32 %v208, %v290
        %292 = vmatprep.mubr.f32.mxu0 0.0
        %293 = vmatmul.mubr.f32.gmra.mxu0 %v220
        %v294 = vpop.f32.mrf.mxu0
        %v295 = vadd.f32 %v213, %v294
        %v296 = vpop.f32.mrf.mxu0
        %v297 = vadd.f32 %v213, %v296
        %298 = vdwg.mxu0
        %v299 = vmax.f32 %v289, 0.0
        %v300 = vmax.f32 %v291, 0.0
        %v301 = vadd.f32 %v299, %v295
        %v302 = vadd.f32 %v300, %v297
        %303 = vst [vmem:[%s188] sm:$0xff] %v301
        %304 = vst [vmem:[%s188 + $0x8] sm:$0xff] %v302
        %s305 = sand.u32 %s96, 1
        %s306 = scalar_lea.sflag [#allocation4], %s305
        %s307 = sand.u32 %s96, 1
        %s308 = smul.addr %s307, 16
        %s309 = scalar_lea.vmem [#allocation5], %s308
        // Predicated region
        $region37: #{tpu_custom_call.1} parent=31 // pred_check
          %p310 = pneg %p106
        $region38: #{tpu_custom_call.1} parent=31 // pred_check_branch
          %312 = sbr.rel (%p310) target = $region40
        $region39: #{tpu_custom_call.1} parent=31 // pred_region
          %s313 = smul.u32 2, %s20
          %s315 = ssub.s32 256, 256
          %316 = vsyncadd %s306, %s315
          %s317 = smul.addr %s313, 128
          %s318 = scalar_lea.hbm %s3, %s317
          %s320 = sshll.u32 %s309, 4
          %s321 = int_to_ptr.vmem [resolvable:$true] %s320
          %323 = dma.vmem_to_hbm [thread:$0]  %s321, 256, %s318, %s306
        $region40: #{tpu_custom_call.1} parent=31 // pred_fallthru
          _
      $region32: #{tpu_custom_call.1} parent=5 // pred_fallthru
        _
      %p324 = scmp.le.s32.totalorder 2, %s15
      // Predicated region
      $region41: #{tpu_custom_call.1} parent=5 // pred_check
        %p325 = pneg %p324
      $region42: #{tpu_custom_call.1} parent=5 // pred_check_branch
        %327 = sbr.rel (%p325) target = $region44
      $region43: #{tpu_custom_call.1} parent=5 // pred_region
        %s328 = ssub.s32 %s15, 2
        // Predicated region
        $region45: #{tpu_custom_call.1} parent=43 // pred_check
          %p329 = pneg %p112
        $region46: #{tpu_custom_call.1} parent=43 // pred_check_branch
          %331 = sbr.rel (%p329) target = $region48
        $region47: #{tpu_custom_call.1} parent=43 // pred_region
          %s332 = sand.u32 %s97, 1
          %s333 = scalar_lea.sflag [#allocation4], %s332
          %s334 = sand.u32 %s97, 1
          %s335 = smul.addr %s334, 16
          %s336 = scalar_lea.vmem [#allocation5], %s335
          %337 = dma.done %s333, 256
        $region48: #{tpu_custom_call.1} parent=43 // pred_fallthru
          _
      $region44: #{tpu_custom_call.1} parent=5 // pred_fallthru
        _
    $region6: #{tpu_custom_call.1} parent=1 // loop_footer
      %s19 = sadd.s32 1, %s15
    $region7: #{tpu_custom_call.1} parent=1 // loop_footer_branch
      %14 = sbr.rel target = $region3
    $region8: #{tpu_custom_call.1} parent=1 // loop_exit
      _
    %338 = vsyncpa [#allocation3], 1
    %s339 = scalar_lea.sflag [#allocation3], 1
    %340 = vsyncpa %s339, 1
    %341 = vsyncpa [#allocation4], 1
    %s342 = scalar_lea.sflag [#allocation4], 1
    %343 = vsyncpa %s342, 1

</llo_original>
